<compile_context>
chip_gen: v5e
topology: v5e:2x2
jax: 0.10.0
libtpu: 0.0.40
codegen_flags: <defaults>
</compile_context>

<pallas_src>
import jax
import jax.numpy as jnp
from jax.experimental import pallas as pl
from jax.experimental.pallas import tpu as pltpu

_MAX_ROWS_PER_STEP = 32768  # VMEM cap for the lane-padded (TB, F) natural-layout block


def _round_up(n, m):
    return ((n + m - 1) // m) * m


def titanic_mlp_kernel(x_ref, w1_ref, b1_ref, w2_ref, b2_ref, w3_ref, b3_ref, o_ref):
    # fc1 + ReLU. x arrives in natural (TB, F) layout; contract the feature (lane)
    # axis of both operands (A @ B.T / "NT" form) so no transpose of x is needed
    # anywhere and the result is feature-major (16, TB): batch on the lane axis.
    h1 = jax.lax.dot_general(
        w1_ref[...], x_ref[...],
        dimension_numbers=(((1,), (1,)), ((), ())),
        preferred_element_type=jnp.float32,
    ) + b1_ref[...]
    h1 = jnp.maximum(h1, 0.0)                                        # (16, TB)

    # fc2 + ReLU: (8,16) @ (16,TB) -> (8,TB) on the MXU.
    h2 = jnp.dot(w2_ref[...], h1, preferred_element_type=jnp.float32) + b2_ref[...]
    h2 = jnp.maximum(h2, 0.0)                                        # (8, TB)

    # fc3 (8 -> 1): VPU broadcast-mul + sublane reduce instead of an N=1 MXU matmul.
    h3 = jnp.sum(w3_ref[...] * h2, axis=0, keepdims=True) + b3_ref[...]  # (1, TB)

    # Numerically robust sigmoid on the EUP (tanh) - no f32 divide, no exp overflow.
    o_ref[...] = 0.5 * (jnp.tanh(0.5 * h3) + 1.0)


def _choose_tile_rows(batch, block_b):
    """Rows per grid step (multiple of 128 unless a single exact block covers B)."""
    tb = min(int(block_b), _MAX_ROWS_PER_STEP)
    tb = max(128, (tb // 128) * 128)
    tb = min(tb, _round_up(batch, 128))
    if batch >= 4 * 128:
        # Keep >= 4 grid steps so v7x's two TensorCores both get work and the
        # input double-buffer actually overlaps compute.
        tb = min(tb, _round_up(pl.cdiv(batch, 4), 128))
    if tb >= batch:
        return batch, 1            # exact single block: no boundary block at all
    return tb, pl.cdiv(batch, tb)  # last block may be partial (masked, no jnp.pad)


def titanic_forward(x, params, *, block_b=_MAX_ROWS_PER_STEP):
    """x: (B, F) float32 in natural layout. Returns (B, 1) sigmoid probabilities."""
    w1, b1, w2, b2, w3, b3 = params
    B, F = x.shape

    tb, grid = _choose_tile_rows(B, block_b)
    out_w = tb * grid

    # Per-step VMEM: 2x double-buffered (tb, F) input lane-padded to 128 lanes
    # (512 B/row/buffer) + h1 (16,tb) + h2 (8,tb) + 2x (1,tb) output buffers.
    vmem_need = 2 * tb * 128 * 4 + tb * 16 * 4 + tb * 8 * 4 + 2 * 8 * tb * 4 + (2 << 20)
    vmem_limit = int(min(max(vmem_need, 16 << 20), 48 << 20))

    n_param = sum(int(p.size) for p in params)
    cost = pl.CostEstimate(
        flops=2 * B * (F * 16 + 16 * 8 + 8),
        transcendentals=B,
        bytes_accessed=B * (F + 1) * 4 + n_param * 4,
    )

    const2d = lambda a: pl.BlockSpec(a.shape, lambda i: (0, 0))  # VMEM-resident weights

    out = pl.pallas_call(
        titanic_mlp_kernel,
        out_shape=jax.ShapeDtypeStruct((1, out_w), jnp.float32),
        grid=(grid,),
        in_specs=[
            pl.BlockSpec((tb, F), lambda i: (i, 0)),   # natural-layout activations
            const2d(w1), const2d(b1),
            const2d(w2), const2d(b2),
            const2d(w3), const2d(b3),
        ],
        out_specs=pl.BlockSpec((1, tb), lambda i: (0, i)),  # lane-dense output slab
        compiler_params=pltpu.CompilerParams(
            dimension_semantics=("parallel",),
            vmem_limit_bytes=vmem_limit,
        ),
        cost_estimate=cost,
    )(x, w1, b1, w2, b2, w3, b3)

    return out[0, :B].reshape(B, 1)


def init_params(key, input_size):
    # Deterministic init mimicking nn.Linear's uniform(-1/sqrt(fan_in), 1/sqrt(fan_in)).
    def linear(k, fan_in, fan_out):
        kw, kb = jax.random.split(k)
        bound = 1.0 / jnp.sqrt(float(fan_in))
        w = jax.random.uniform(kw, (fan_out, fan_in), jnp.float32, -bound, bound)  # (out,in)
        b = jax.random.uniform(kb, (fan_out, 1), jnp.float32, -bound, bound)       # (out,1)
        return w, b

    k1, k2, k3 = jax.random.split(key, 3)
    w1, b1 = linear(k1, input_size, 16)      # (16, F), (16, 1)
    w2, b2 = linear(k2, 16, 8)               # (8, 16), (8, 1)
    w3t, b3 = linear(k3, 8, 1)               # (1, 8),  (1, 1)
    w3 = w3t.T                               # store as (8, 1) for the VPU epilogue
    return (w1, b1, w2, b2, w3, b3)


def reference_forward(x, params):
    w1, b1, w2, b2, w3, b3 = params
    h = jnp.maximum(x @ w1.T + b1.T, 0.0)    # (B, 16)
    h = jnp.maximum(h @ w2.T + b2.T, 0.0)    # (B, 8)
    return jax.nn.sigmoid(h @ w3 + b3)       # (B, 1)


if __name__ == "__main__":
    input_size = 6   # Titanic features after drops: Pclass, Sex, Age, SibSp, Parch, Fare

    key = jax.random.PRNGKey(0)
    kx, kp, kx2, kx3 = jax.random.split(key, 4)
    params = init_params(kp, input_size)

    # Small canonical case (single exact block, lane width 8).
    x = jax.random.normal(kx, (8, input_size), jnp.float32)
    out = jax.block_until_ready(titanic_forward(x, params))
    ref = reference_forward(x, params)
    assert out.shape == (8, 1), out.shape
    assert jnp.allclose(out, ref, atol=1e-5, rtol=1e-5)

    # Non-multiple-of-128 batch, no padding pass (single exact block of 300 rows).
    x2 = jax.random.normal(kx2, (300, input_size), jnp.float32)
    out2 = jax.block_until_ready(titanic_forward(x2, params))
    ref2 = reference_forward(x2, params)
    assert out2.shape == (300, 1), out2.shape
    assert jnp.allclose(out2, ref2, atol=1e-5, rtol=1e-5)

    # Multi-step grid exercising the pipelined batch axis (4 steps of 256 rows).
    x3 = jax.random.normal(kx3, (1024, input_size), jnp.float32)
    out3 = jax.block_until_ready(titanic_forward(x3, params, block_b=256))
    ref3 = reference_forward(x3, params)
    assert out3.shape == (1024, 1), out3.shape
    assert jnp.allclose(out3, ref3, atol=1e-5, rtol=1e-5)

    print("KERNEL_OK")
</pallas_src>

<mosaic_0001>
module attributes {stable_mosaic.version = 11 : i64} {
  func.func @titanic_mlp_kernel(%arg0: i32, %arg1: memref<8x6xf32, #tpu.memory_space<vmem>>, %arg2: memref<16x6xf32, #tpu.memory_space<vmem>>, %arg3: memref<16x1xf32, #tpu.memory_space<vmem>>, %arg4: memref<8x16xf32, #tpu.memory_space<vmem>>, %arg5: memref<8x1xf32, #tpu.memory_space<vmem>>, %arg6: memref<8x1xf32, #tpu.memory_space<vmem>>, %arg7: memref<1x1xf32, #tpu.memory_space<vmem>>, %arg8: memref<1x8xf32, #tpu.memory_space<vmem>>) attributes {dimension_semantics = [#tpu.dimension_semantics<parallel>], iteration_bounds = array<i64: 1>, scalar_prefetch = 0 : i64, scratch_operands = 0 : i64, tpu.core_type = #tpu.core_type<tc>, window_params = [{transform_indices = @transform_0, window_bounds = array<i64: 8, 6>}, {pipeline_mode = #tpu.pipeline_mode<synchronous>, transform_indices = @transform_1, window_bounds = array<i64: 16, 6>}, {pipeline_mode = #tpu.pipeline_mode<synchronous>, transform_indices = @transform_2, window_bounds = array<i64: 16, 1>}, {pipeline_mode = #tpu.pipeline_mode<synchronous>, transform_indices = @transform_3, window_bounds = array<i64: 8, 16>}, {pipeline_mode = #tpu.pipeline_mode<synchronous>, transform_indices = @transform_4, window_bounds = array<i64: 8, 1>}, {pipeline_mode = #tpu.pipeline_mode<synchronous>, transform_indices = @transform_5, window_bounds = array<i64: 8, 1>}, {pipeline_mode = #tpu.pipeline_mode<synchronous>, transform_indices = @transform_6, window_bounds = array<i64: 1, 1>}, {transform_indices = @transform_7, window_bounds = array<i64: 1, 8>}]} {
    %c0 = arith.constant 0 : index
    %c0_0 = arith.constant 0 : index
    %0 = vector.load %arg2[%c0, %c0_0] : memref<16x6xf32, #tpu.memory_space<vmem>>, vector<16x6xf32>
    %c0_1 = arith.constant 0 : index
    %c0_2 = arith.constant 0 : index
    %1 = vector.load %arg1[%c0_1, %c0_2] : memref<8x6xf32, #tpu.memory_space<vmem>>, vector<8x6xf32>
    %cst = arith.constant dense<0.000000e+00> : vector<16x8xf32>
    %2 = tpu.matmul %0, %1, %cst {dimension_numbers = #tpu.dot_dimension_numbers<[1], [1], [0], [0], [0, 0, 1, 0], [], []>} : vector<16x6xf32>, vector<8x6xf32>, vector<16x8xf32> -> vector<16x8xf32>
    %c0_3 = arith.constant 0 : index
    %c0_4 = arith.constant 0 : index
    %3 = vector.load %arg3[%c0_3, %c0_4] : memref<16x1xf32, #tpu.memory_space<vmem>>, vector<16x1xf32>
    %4 = vector.broadcast %3 : vector<16x1xf32> to vector<16x8xf32>
    %5 = arith.addf %2, %4 : vector<16x8xf32>
    %cst_5 = arith.constant 0.000000e+00 : f32
    %6 = vector.broadcast %cst_5 : f32 to vector<16x8xf32>
    %7 = arith.maximumf %5, %6 : vector<16x8xf32>
    %c0_6 = arith.constant 0 : index
    %c0_7 = arith.constant 0 : index
    %8 = vector.load %arg4[%c0_6, %c0_7] : memref<8x16xf32, #tpu.memory_space<vmem>>, vector<8x16xf32>
    %cst_8 = arith.constant dense<0.000000e+00> : vector<8x8xf32>
    %9 = tpu.matmul %8, %7, %cst_8 {dimension_numbers = #tpu.dot_dimension_numbers<[1], [0], [0], [1], [0, 0, 1, 1], [], []>} : vector<8x16xf32>, vector<16x8xf32>, vector<8x8xf32> -> vector<8x8xf32>
    %c0_9 = arith.constant 0 : index
    %c0_10 = arith.constant 0 : index
    %10 = vector.load %arg5[%c0_9, %c0_10] : memref<8x1xf32, #tpu.memory_space<vmem>>, vector<8x1xf32>
    %11 = vector.broadcast %10 : vector<8x1xf32> to vector<8x8xf32>
    %12 = arith.addf %9, %11 : vector<8x8xf32>
    %cst_11 = arith.constant 0.000000e+00 : f32
    %13 = vector.broadcast %cst_11 : f32 to vector<8x8xf32>
    %14 = arith.maximumf %12, %13 : vector<8x8xf32>
    %c0_12 = arith.constant 0 : index
    %c0_13 = arith.constant 0 : index
    %15 = vector.load %arg6[%c0_12, %c0_13] : memref<8x1xf32, #tpu.memory_space<vmem>>, vector<8x1xf32>
    %16 = vector.broadcast %15 : vector<8x1xf32> to vector<8x8xf32>
    %17 = arith.mulf %16, %14 : vector<8x8xf32>
    %cst_14 = arith.constant dense<0.000000e+00> : vector<8xf32>
    %18 = vector.multi_reduction <add>, %17, %cst_14 [0] : vector<8x8xf32> to vector<8xf32>
    %19 = vector.shape_cast %18 : vector<8xf32> to vector<1x8xf32>
    %c0_15 = arith.constant 0 : index
    %c0_16 = arith.constant 0 : index
    %20 = vector.load %arg7[%c0_15, %c0_16] : memref<1x1xf32, #tpu.memory_space<vmem>>, vector<1x1xf32>
    %21 = vector.broadcast %20 : vector<1x1xf32> to vector<1x8xf32>
    %22 = arith.addf %19, %21 : vector<1x8xf32>
    %cst_17 = arith.constant 5.000000e-01 : f32
    %23 = vector.broadcast %cst_17 : f32 to vector<1x8xf32>
    %24 = arith.mulf %23, %22 : vector<1x8xf32>
    %25 = math.tanh %24 : vector<1x8xf32>
    %cst_18 = arith.constant 1.000000e+00 : f32
    %26 = vector.broadcast %cst_18 : f32 to vector<1x8xf32>
    %27 = arith.addf %25, %26 : vector<1x8xf32>
    %cst_19 = arith.constant 5.000000e-01 : f32
    %28 = vector.broadcast %cst_19 : f32 to vector<1x8xf32>
    %29 = arith.mulf %28, %27 : vector<1x8xf32>
    %c0_20 = arith.constant 0 : index
    %c0_21 = arith.constant 0 : index
    %30 = vector.load %arg8[%c0_20, %c0_21] : memref<1x8xf32, #tpu.memory_space<vmem>>, vector<1x8xf32>
    tpu.vector_store %arg8[%c0_20, %c0_21], %29 {strides = array<i32>} : memref<1x8xf32, #tpu.memory_space<vmem>>, vector<1x8xf32>,
    return
  }
  func.func @transform_0(%arg0: i32) -> (i32, i32) {
    %c0_i32 = arith.constant 0 : i32
    %c0_i32_0 = arith.constant 0 : i32
    return %arg0, %c0_i32 : i32, i32
  }
  func.func @transform_1(%arg0: i32) -> (i32, i32) {
    %c0_i32 = arith.constant 0 : i32
    %c0_i32_0 = arith.constant 0 : i32
    %c0_i32_1 = arith.constant 0 : i32
    return %c0_i32, %c0_i32_0 : i32, i32
  }
  func.func @transform_2(%arg0: i32) -> (i32, i32) {
    %c0_i32 = arith.constant 0 : i32
    %c0_i32_0 = arith.constant 0 : i32
    %c0_i32_1 = arith.constant 0 : i32
    return %c0_i32, %c0_i32_0 : i32, i32
  }
  func.func @transform_3(%arg0: i32) -> (i32, i32) {
    %c0_i32 = arith.constant 0 : i32
    %c0_i32_0 = arith.constant 0 : i32
    %c0_i32_1 = arith.constant 0 : i32
    return %c0_i32, %c0_i32_0 : i32, i32
  }
  func.func @transform_4(%arg0: i32) -> (i32, i32) {
    %c0_i32 = arith.constant 0 : i32
    %c0_i32_0 = arith.constant 0 : i32
    %c0_i32_1 = arith.constant 0 : i32
    return %c0_i32, %c0_i32_0 : i32, i32
  }
  func.func @transform_5(%arg0: i32) -> (i32, i32) {
    %c0_i32 = arith.constant 0 : i32
    %c0_i32_0 = arith.constant 0 : i32
    %c0_i32_1 = arith.constant 0 : i32
    return %c0_i32, %c0_i32_0 : i32, i32
  }
  func.func @transform_6(%arg0: i32) -> (i32, i32) {
    %c0_i32 = arith.constant 0 : i32
    %c0_i32_0 = arith.constant 0 : i32
    %c0_i32_1 = arith.constant 0 : i32
    return %c0_i32, %c0_i32_0 : i32, i32
  }
  func.func @transform_7(%arg0: i32) -> (i32, i32) {
    %c0_i32 = arith.constant 0 : i32
    %c0_i32_0 = arith.constant 0 : i32
    return %c0_i32, %arg0 : i32, i32
  }
}

</mosaic_0001>

<llo_original>
// kernel: tpu_custom_call.1
$region0: #{tpu_custom_call.1}
  #allocation0 [shape = 'u32[]', space=smem, size = 0x4, offset = 0x4, fixed_abs, tag = 'smem constant byte address 0x4 - core index']
  #allocation1 [shape = 'u32[72,128]{1,0:T(1,128)}', space=vmem, size = 0x9000, scoped, tag = 'internal scratch']
  #allocation2 [shape = 'f32[1,1]{1,0:T(1,128)S(1)}', space=vmem, size = 0x200, scoped, tag = 'scoped memory for tpu_custom_call.1']
  %s0 = inlined_call_operand.vmem [shape: f32[8,6], index: 0, kind: input, shape index: {}]
  %s1 = inlined_call_operand.vmem [shape: f32[16,6], index: 1, kind: input, shape index: {}]
  %s2 = inlined_call_operand.vmem [shape: f32[16,1], index: 2, kind: input, shape index: {}]
  %s3 = inlined_call_operand.vmem [shape: f32[8,16], index: 3, kind: input, shape index: {}]
  %s4 = inlined_call_operand.vmem [shape: f32[8,1], index: 4, kind: input, shape index: {}]
  %s5 = inlined_call_operand.vmem [shape: f32[8,1], index: 5, kind: input, shape index: {}]
  %s6 = inlined_call_operand.<no memory space> [shape: f32[1,1], index: 6, kind: input, shape index: {}]
  %s7 = inlined_call_operand.hbm [shape: f32[1,8], index: 7, kind: output, shape index: {}]
  %s8 = sld [smem:[#allocation0]]
  $region38: #{tpu_custom_call.1} parent=0
    _
  %s10 = ssub.s32 1, %s8
  %s11 = scalar_select 0, %s10, %s8
  %v12 = vstv %s6
  %13 = vst [vmem:[#allocation2] sm:$0x1] %v12
  $region1: #{tpu_custom_call.1} parent=0
    #allocation3 [shape = 'u8[512]{0}', space=vmem, size = 0x400, scoped, tag = 'output window, operand 0, single buffered']
    #allocation4 [shape = 's32[1]{0}', space=sflag, size = 0x4, scoped, tag = 'scoped memory for tpu_custom_call.1']
    %14 = vsyncpa [#allocation4], 0
    // Predicated region
    $region2: #{tpu_custom_call.1} parent=1 // pred_check
      _
    $region3: #{tpu_custom_call.1} parent=1 // pred_check_branch
      %16 = sbr.rel (0) target = $region5
    $region4: #{tpu_custom_call.1} parent=1 // pred_region
      _
    $region5: #{tpu_custom_call.1} parent=1 // pred_fallthru
      _
    // Predicated region
    $region6: #{tpu_custom_call.1} parent=1 // pred_check
      _
    $region7: #{tpu_custom_call.1} parent=1 // pred_check_branch
      %18 = sbr.rel (0) target = $region9
    $region8: #{tpu_custom_call.1} parent=1 // pred_region
      _
    $region9: #{tpu_custom_call.1} parent=1 // pred_fallthru
      _
    // Predicated region
    $region10: #{tpu_custom_call.1} parent=1 // pred_check
      _
    $region11: #{tpu_custom_call.1} parent=1 // pred_check_branch
      %20 = sbr.rel (0) target = $region13
    $region12: #{tpu_custom_call.1} parent=1 // pred_region
      _
    $region13: #{tpu_custom_call.1} parent=1 // pred_fallthru
      _
    // Predicated region
    $region14: #{tpu_custom_call.1} parent=1 // pred_check
      _
    $region15: #{tpu_custom_call.1} parent=1 // pred_check_branch
      %22 = sbr.rel (0) target = $region17
    $region16: #{tpu_custom_call.1} parent=1 // pred_region
      _
    $region17: #{tpu_custom_call.1} parent=1 // pred_fallthru
      _
    // Predicated region
    $region18: #{tpu_custom_call.1} parent=1 // pred_check
      _
    $region19: #{tpu_custom_call.1} parent=1 // pred_check_branch
      %24 = sbr.rel (0) target = $region21
    $region20: #{tpu_custom_call.1} parent=1 // pred_region
      _
    $region21: #{tpu_custom_call.1} parent=1 // pred_fallthru
      _
    // Predicated region
    $region22: #{tpu_custom_call.1} parent=1 // pred_check
      _
    $region23: #{tpu_custom_call.1} parent=1 // pred_check_branch
      %26 = sbr.rel (0) target = $region25
    $region24: #{tpu_custom_call.1} parent=1 // pred_region
      _
    $region25: #{tpu_custom_call.1} parent=1 // pred_fallthru
      _
    // Predicated region
    $region26: #{tpu_custom_call.1} parent=1 // pred_check
      _
    $region27: #{tpu_custom_call.1} parent=1 // pred_check_branch
      %28 = sbr.rel (0) target = $region29
    $region28: #{tpu_custom_call.1} parent=1 // pred_region
      _
    $region29: #{tpu_custom_call.1} parent=1 // pred_fallthru
      _
    %v29 = vld [vmem:[%s1] sm:$0xff]
    %v30 = vld [vmem:[%s1 + $0x8] sm:$0xff]
    %v31 = vld [vmem:[%s0] sm:$0xff]
    %v32 = vld [vmem:[%s2] sm:$0xff]
    %v33 = vld [vmem:[%s2 + $0x8] sm:$0xff]
    %35 = vset.pattern.permute.xlu0 0
    %36 = vperm.xlu0 %35, %v32
    %v37 = vpop.permute.xlu0 %36
    %40 = vset.pattern.permute.xlu0 0
    %41 = vperm.xlu0 %40, %v33
    %v42 = vpop.permute.xlu0 %41
    %vm44 = vcmask 48128
    %v46 = vsel %vm44, %v29, 0
    %v49 = vsel %vm44, %v30, 0
    %v52 = vsel %vm44, %v31, 0
    %54 = vmatpush.xpose.msra.mxu0 0.0
    %55 = vmatpush.xpose.msra.mxu0 0.0
    %56 = vmatpush.xpose.msra.mxu0 0.0
    %57 = vmatpush.xpose.msra.mxu0 0.0
    %58 = vmatpush.xpose.msra.mxu0 0.0
    %59 = vmatpush.xpose.msra.mxu0 0.0
    %60 = vmatpush.xpose.msra.mxu0 0.0
    %61 = vmatpush.xpose.msra.mxu0 0.0
    %62 = vmatpush.xpose.msra.mxu0 0.0
    %63 = vmatpush.xpose.msra.mxu0 0.0
    %64 = vmatpush.xpose.msra.mxu0 0.0
    %65 = vmatpush.xpose.msra.mxu0 0.0
    %66 = vmatpush.xpose.msra.mxu0 0.0
    %67 = vmatpush.xpose.msra.mxu0 0.0
    %68 = vmatpush.xpose.msra.mxu0 0.0
    %69 = vmatpush.xpose.msra.mxu0 %v52
    %70 = vmatmul.f32.gmra.mxu0 %v46
    %v71 = vpop.f32.mrf.mxu0
    %v72 = vadd.f32 %v37, %v71
    %73 = vmatmul.f32.gmra.mxu0 %v49
    %v74 = vpop.f32.mrf.mxu0
    %v75 = vadd.f32 %v42, %v74
    %76 = vdwg.mxu0
    %v77 = vmax.f32 %v72, 0.0
    %v78 = vmax.f32 %v75, 0.0
    %v79 = vld [vmem:[%s3] sm:$0xff]
    %v80 = vld [vmem:[%s4] sm:$0xff]
    %82 = vset.pattern.permute.xlu0 0
    %83 = vperm.xlu0 %82, %v80
    %v84 = vpop.permute.xlu0 %83
    %vm86 = vcmask 130048
    %v88 = vsel %vm86, %v79, 0
    %90 = vmatpush.msra.mxu0 0.0
    %91 = vmatpush.msra.mxu0 0.0
    %92 = vmatpush.msra.mxu0 0.0
    %93 = vmatpush.msra.mxu0 0.0
    %94 = vmatpush.msra.mxu0 0.0
    %95 = vmatpush.msra.mxu0 0.0
    %96 = vmatpush.msra.mxu0 0.0
    %97 = vmatpush.msra.mxu0 0.0
    %98 = vmatpush.msra.mxu0 0.0
    %99 = vmatpush.msra.mxu0 0.0
    %100 = vmatpush.msra.mxu0 0.0
    %101 = vmatpush.msra.mxu0 0.0
    %102 = vmatpush.msra.mxu0 0.0
    %103 = vmatpush.msra.mxu0 0.0
    %104 = vmatpush.msra.mxu0 %v78
    %105 = vmatpush.msra.mxu0 %v77
    %106 = vmatmul.f32.gmra.mxu0 %v88
    %v107 = vpop.f32.mrf.mxu0
    %v108 = vadd.f32 %v84, %v107
    %109 = vdwg.mxu0
    %v110 = vmax.f32 %v108, 0.0
    %v111 = vld [vmem:[%s5] sm:$0xff]
    %113 = vset.pattern.permute.xlu0 0
    %114 = vperm.xlu0 %113, %v111
    %v115 = vpop.permute.xlu0 %114
    %v117 = vmul.f32 %v115, %v110
    %vm118 = vcmask 64512
    %v119 = vsel %vm118, %v117, 0.0
    %v120 = vrot.slane %v119, 4
    %v121 = vadd.f32 %v119, %v120
    %v122 = vrot.slane %v121, 2
    %v123 = vadd.f32 %v121, %v122
    %v124 = vrot.slane %v123, 1
    %v125 = vadd.f32 %v123, %v124
    %v126 = vld [vmem:[#allocation2] sm:$0x1]
    %128 = vset.pattern.permute.xlu0 0
    %129 = vperm.xlu0 %128, %v126
    %v130 = vpop.permute.xlu0 %129
    %v132 = vperm.slane %v130, 0
    %v133 = vadd.f32 %v125, %v132
    %v134 = vmul.f32 %v133, 0.5
    %v135 = vtanh.pop %v134
    %v136 = vadd.f32 %v135, 1.0
    %v137 = vmul.f32 %v136, 0.5
    %vm138 = vcmask 57344
    %139 = vst.msk [vmem:[#allocation3] sm:$0x1] %vm138, %v137
    // Predicated region
    $region30: #{tpu_custom_call.1} parent=1 // pred_check
      _
    $region31: #{tpu_custom_call.1} parent=1 // pred_check_branch
      %141 = sbr.rel (0) target = $region33
    $region32: #{tpu_custom_call.1} parent=1 // pred_region
      %143 = vsyncadd [#allocation4], 0
      %s145 = sshll.u32 [#allocation3], 4
      %s146 = int_to_ptr.vmem [resolvable:$true] %s145
      %s147 = sshll.u32 %s7, 4
      %s148 = int_to_ptr.hbm [resolvable:$true] %s147
      %150 = dma.vmem_to_hbm [thread:$0]  %s146, 16, %s148, [#allocation4]
    $region33: #{tpu_custom_call.1} parent=1 // pred_fallthru
      _
    // Predicated region
    $region34: #{tpu_custom_call.1} parent=1 // pred_check
      _
    $region35: #{tpu_custom_call.1} parent=1 // pred_check_branch
      %152 = sbr.rel (0) target = $region37
    $region36: #{tpu_custom_call.1} parent=1 // pred_region
      %154 = dma.done [#allocation4], 16
    $region37: #{tpu_custom_call.1} parent=1 // pred_fallthru
      _
    %155 = vsyncpa [#allocation4], 1

</llo_original>
